<compile_context>
chip_gen: v6e
topology: v6e:2x2x1
jax: 0.10.0
libtpu: 0.0.40
codegen_flags: <defaults>
</compile_context>

<pallas_src>
import functools

import jax
import jax.numpy as jnp
from jax.experimental import pallas as pl
from jax.experimental.pallas import tpu as pltpu


def _downsample_kernel(x_ref, w_ref, shift_ref, *rest, W, use_sel):
    if use_sel:
        sel_ref, o_ref = rest
    else:
        (o_ref,) = rest

    x = x_ref[...]                       # (R, L) with R = TB*Cin, L = H*W (lane-dense)
    R, L = x.shape
    # NOTE: -inf padding assumes a floating-point input dtype (f32 / bf16).
    neg = jnp.asarray(-jnp.inf, dtype=x.dtype)

    # Small (1, L) lane-index masks, broadcast inside the selects (no (R, L) int32 tensor).
    lane = jax.lax.broadcasted_iota(jnp.int32, (1, L), 1)
    col = lane % W
    is_w_first = col == 0
    is_w_last = col == W - 1
    is_h_first = lane < W            # h == 0
    is_h_last = lane >= (L - W)      # h == H-1

    # --- 1x3 max along W (stride 1, pad 1): XLU lane rotations + row-edge masks.
    x_l = jnp.where(is_w_first, neg, pltpu.roll(x, 1, 1))        # value at w-1
    x_r = jnp.where(is_w_last, neg, pltpu.roll(x, L - 1, 1))     # value at w+1
    mw = jnp.maximum(jnp.maximum(x_l, x), x_r)

    # --- 3x1 max along H (stride 1, pad 1): rotate by whole rows on the flat lane axis.
    m_u = jnp.where(is_h_first, neg, pltpu.roll(mw, W, 1))       # value at h-1
    m_d = jnp.where(is_h_last, neg, pltpu.roll(mw, L - W, 1))    # value at h+1
    m = jnp.maximum(jnp.maximum(m_u, mw), m_d)                   # 3x3 max, stride 1, pad 1

    w_bd = w_ref[...]        # (TB*Cout, TB*Cin) block-diagonal, BN scale already folded in
    shift = shift_ref[...]   # (TB*Cout, 1) f32 BN shift

    if use_sel:
        # Exact 0/1 stride-selection: one batched matmul on the otherwise idle MXU.
        sel = sel_ref[...]   # (L, Lo)
        pooled = jnp.dot(m, sel, preferred_element_type=jnp.float32)      # (R, Lo)
    else:
        pooled = m           # stride == 1: selection is the identity

    # One batched conv matmul for all TB samples (block-diagonal weight).
    y = jnp.dot(w_bd, pooled.astype(w_bd.dtype),
                preferred_element_type=jnp.float32)                        # (TB*Cout, Lo)
    o_ref[...] = jnp.maximum(y + shift, 0.0).astype(o_ref.dtype)           # BN shift + ReLU


def _vmem_budget_bytes():
    """Per-generation block budget; conservative fallback if the query is unavailable."""
    try:
        cap = int(pltpu.get_tpu_info().vmem_capacity_bytes)
    except Exception:
        return 12 * 1024 * 1024
    if cap >= 96 * 1024 * 1024:          # v5e / v6e (128 MiB physical VMEM)
        return 24 * 1024 * 1024
    return 16 * 1024 * 1024              # v7x (64 MiB per TensorCore)


def downsample(x, conv_w, bn_gamma, bn_beta, bn_mean, bn_var, *, stride,
               eps=1e-5, block_batch=None, vmem_budget_bytes=None):
    """Fused Downsample forward.  x: (B, Cin, H, W); conv_w: (Cout, Cin) or (Cout, Cin, 1, 1)."""
    B, Cin, H, W = x.shape
    conv_w = conv_w.reshape(conv_w.shape[0], -1)
    Cout = conv_w.shape[0]
    Ho = (H + 2 - 3) // stride + 1
    Wo = (W + 2 - 3) // stride + 1
    L, Lo = H * W, Ho * Wo
    use_sel = stride != 1

    # MXU operand dtype: bf16 inputs -> bf16 operands (f32 accumulate); otherwise f32 (exact).
    op_dtype = jnp.bfloat16 if x.dtype == jnp.bfloat16 else jnp.float32
    x_itemsize = jnp.dtype(x.dtype).itemsize
    op_itemsize = jnp.dtype(op_dtype).itemsize

    # Fold eval-mode BatchNorm into the 1x1 conv weight + per-channel shift.
    inv_std = 1.0 / jnp.sqrt(bn_var.astype(jnp.float32) + eps)
    scale = bn_gamma.astype(jnp.float32) * inv_std
    w_scaled = scale[:, None] * conv_w.astype(jnp.float32)                    # (Cout, Cin)
    shift = (bn_beta.astype(jnp.float32)
             - bn_mean.astype(jnp.float32) * scale).reshape(Cout, 1)          # (Cout, 1)

    # ---- choose samples-per-step (TB) -------------------------------------------------
    sel_bytes = 0 if not use_sel else L * Lo * op_itemsize

    def estimate_vmem(tb):
        rows_in, rows_out = tb * Cin, tb * Cout
        x_bytes = rows_in * L * x_itemsize
        out_bytes = rows_out * Lo * x_itemsize
        tmp_bytes = 5 * rows_in * L * x_itemsize            # live pooling temporaries
        acc_bytes = (rows_in + rows_out) * Lo * 4           # pooled + y in f32
        const_bytes = sel_bytes + rows_out * rows_in * op_itemsize + rows_out * 4
        return 2 * (x_bytes + out_bytes) + tmp_bytes + acc_bytes + 2 * const_bytes

    # Blocks must have their second-minor dim divisible by 8 or equal the full array dim.
    legal = []
    for tb in range(1, B + 1):
        if B % tb:
            continue
        ok_in = (tb * Cin) % 8 == 0 or tb == B
        ok_out = (tb * Cout) % 8 == 0 or tb == B
        if ok_in and ok_out:
            legal.append(tb)

    budget = vmem_budget_bytes if vmem_budget_bytes is not None else _vmem_budget_bytes()
    if block_batch is None:
        fitting = [tb for tb in legal if estimate_vmem(tb) <= budget]
        if fitting:
            multi_step = [tb for tb in fitting if B // tb >= 2]   # keep >=2 steps (megacore)
            TB = max(multi_step) if multi_step else max(fitting)
        else:
            TB = legal[0]
    else:
        TB = block_batch
    assert B % TB == 0, "block_batch must divide the batch size"

    vmem_limit = int(min(max(2 * budget, 32 * 1024 * 1024), 48 * 1024 * 1024))

    # ---- constant operands --------------------------------------------------------------
    # Block-diagonal BN-folded conv weight so the conv is ONE matmul for all TB samples.
    w_bd = jnp.kron(jnp.eye(TB, dtype=jnp.float32), w_scaled).astype(op_dtype)  # (TB*Cout, TB*Cin)
    shift_bd = jnp.tile(shift, (TB, 1))                                         # (TB*Cout, 1) f32

    args = [x.reshape(B * Cin, L), w_bd, shift_bd]
    in_specs = [
        pl.BlockSpec((TB * Cin, L), lambda b: (b, 0)),           # x, spatial flattened on lanes
        pl.BlockSpec((TB * Cout, TB * Cin), lambda b: (0, 0)),   # block-diag BN-folded weight
        pl.BlockSpec((TB * Cout, 1), lambda b: (0, 0)),          # BN shift
    ]
    if use_sel:
        # 0/1 stride-selection on the flattened spatial axis: picks (h, w) = (s*i, s*j).
        rows = (jnp.arange(Ho) * stride)[:, None] * W + (jnp.arange(Wo) * stride)[None, :]
        sel = jnp.zeros((L, Lo), jnp.float32).at[rows.reshape(-1), jnp.arange(Lo)].set(1.0)
        args.append(sel.astype(op_dtype))
        in_specs.append(pl.BlockSpec((L, Lo), lambda b: (0, 0)))

    kernel = functools.partial(_downsample_kernel, W=W, use_sel=use_sel)

    out_flat = pl.pallas_call(
        kernel,
        out_shape=jax.ShapeDtypeStruct((B * Cout, Lo), x.dtype),
        grid_spec=pltpu.PrefetchScalarGridSpec(
            num_scalar_prefetch=0,
            grid=(B // TB,),
            in_specs=in_specs,
            out_specs=pl.BlockSpec((TB * Cout, Lo), lambda b: (b, 0)),
        ),
        compiler_params=pltpu.CompilerParams(
            dimension_semantics=("parallel",),
            vmem_limit_bytes=vmem_limit,
        ),
    )(*args)

    return out_flat.reshape(B, Cout, Ho, Wo)


def downsample_ref(x, conv_w, bn_gamma, bn_beta, bn_mean, bn_var, *, stride, eps=1e-5):
    """Pure-JAX reference mirroring the PyTorch forward (eval-mode BN)."""
    xp = jax.lax.reduce_window(
        x, -jnp.inf, jax.lax.max,
        window_dimensions=(1, 1, 3, 3),
        window_strides=(1, 1, stride, stride),
        padding=((0, 0), (0, 0), (1, 1), (1, 1)))
    y = jnp.einsum('oc,bchw->bohw', conv_w.reshape(conv_w.shape[0], -1), xp)
    inv_std = 1.0 / jnp.sqrt(bn_var + eps)
    y = ((y - bn_mean[None, :, None, None]) * inv_std[None, :, None, None]
         * bn_gamma[None, :, None, None] + bn_beta[None, :, None, None])
    return jax.nn.relu(y)


if __name__ == "__main__":
    B, Cin, Cout, H, W, stride = 2, 4, 8, 16, 16, 2

    key = jax.random.PRNGKey(0)
    kx, kw, kg, kb, km, kv = jax.random.split(key, 6)

    x = jax.random.normal(kx, (B, Cin, H, W), dtype=jnp.float32)
    conv_w = jax.random.normal(kw, (Cout, Cin), dtype=jnp.float32) * 0.2
    bn_gamma = jax.random.normal(kg, (Cout,), dtype=jnp.float32) * 0.5 + 1.0
    bn_beta = jax.random.normal(kb, (Cout,), dtype=jnp.float32) * 0.1
    bn_mean = jax.random.normal(km, (Cout,), dtype=jnp.float32) * 0.1
    bn_var = jax.random.uniform(kv, (Cout,), dtype=jnp.float32, minval=0.5, maxval=1.5)

    out = downsample(x, conv_w, bn_gamma, bn_beta, bn_mean, bn_var, stride=stride)
    out = jax.block_until_ready(out)
    ref = downsample_ref(x, conv_w, bn_gamma, bn_beta, bn_mean, bn_var, stride=stride)
    assert out.shape == ref.shape == (B, Cout, H // stride, W // stride)
    assert jnp.allclose(out, ref, atol=1e-5, rtol=1e-5), "mismatch vs reference (stride=2)"

    # stride == 1 variant exercises the path that skips the selection matmul.
    out1 = jax.block_until_ready(
        downsample(x, conv_w, bn_gamma, bn_beta, bn_mean, bn_var, stride=1))
    ref1 = downsample_ref(x, conv_w, bn_gamma, bn_beta, bn_mean, bn_var, stride=1)
    assert out1.shape == ref1.shape == (B, Cout, H, W)
    assert jnp.allclose(out1, ref1, atol=1e-5, rtol=1e-5), "mismatch vs reference (stride=1)"

    print("KERNEL_OK")
</pallas_src>

<mosaic_0001>
module attributes {stable_mosaic.version = 11 : i64} {
  func.func @_downsample_kernel(%arg0: i32, %arg1: memref<8x256xf32, #tpu.memory_space<vmem>>, %arg2: memref<16x8xf32, #tpu.memory_space<vmem>>, %arg3: memref<16x1xf32, #tpu.memory_space<vmem>>, %arg4: memref<256x64xf32, #tpu.memory_space<vmem>>, %arg5: memref<16x64xf32, #tpu.memory_space<vmem>>) attributes {dimension_semantics = [#tpu.dimension_semantics<parallel>], iteration_bounds = array<i64: 1>, scalar_prefetch = 0 : i64, scratch_operands = 0 : i64, tpu.core_type = #tpu.core_type<tc>, window_params = [{transform_indices = @transform_0, window_bounds = array<i64: 8, 256>}, {pipeline_mode = #tpu.pipeline_mode<synchronous>, transform_indices = @transform_1, window_bounds = array<i64: 16, 8>}, {pipeline_mode = #tpu.pipeline_mode<synchronous>, transform_indices = @transform_2, window_bounds = array<i64: 16, 1>}, {pipeline_mode = #tpu.pipeline_mode<synchronous>, transform_indices = @transform_3, window_bounds = array<i64: 256, 64>}, {transform_indices = @transform_4, window_bounds = array<i64: 16, 64>}]} {
    %c0 = arith.constant 0 : index
    %c0_0 = arith.constant 0 : index
    %0 = vector.load %arg1[%c0, %c0_0] : memref<8x256xf32, #tpu.memory_space<vmem>>, vector<8x256xf32>
    %1 = tpu.iota {dimensions = array<i32: 1>} : vector<1x256xi32>
    %c16_i32 = arith.constant 16 : i32
    %c0_i32 = arith.constant 0 : i32
    %2 = arith.cmpi eq, %c16_i32, %c0_i32 : i32
    %c1_i32 = arith.constant 1 : i32
    %3 = arith.select %2, %c1_i32, %c16_i32 : i32
    %4 = vector.broadcast %3 : i32 to vector<1x256xi32>
    %5 = arith.remsi %1, %4 : vector<1x256xi32>
    %c0_i32_1 = arith.constant 0 : i32
    %6 = vector.broadcast %c0_i32_1 : i32 to vector<1x256xi32>
    %7 = arith.cmpi ne, %5, %6 : vector<1x256xi32>
    %c0_i32_2 = arith.constant 0 : i32
    %8 = vector.broadcast %c0_i32_2 : i32 to vector<1x256xi32>
    %9 = arith.cmpi slt, %5, %8 : vector<1x256xi32>
    %c0_i32_3 = arith.constant 0 : i32
    %10 = arith.cmpi slt, %3, %c0_i32_3 : i32
    %11 = vector.broadcast %10 : i1 to vector<1x256xi1>
    %12 = vector.broadcast %11 : vector<1x256xi1> to vector<1x256xi1>
    %13 = arith.xori %9, %12 : vector<1x256xi1>
    %14 = arith.andi %13, %7 : vector<1x256xi1>
    %15 = vector.broadcast %3 : i32 to vector<1x256xi32>
    %16 = arith.addi %5, %15 : vector<1x256xi32>
    %17 = arith.select %14, %16, %5 : vector<1x256xi1>, vector<1x256xi32>
    %c0_i32_4 = arith.constant 0 : i32
    %18 = vector.broadcast %c0_i32_4 : i32 to vector<1x256xi32>
    %19 = arith.cmpi eq, %17, %18 : vector<1x256xi32>
    %c15_i32 = arith.constant 15 : i32
    %20 = vector.broadcast %c15_i32 : i32 to vector<1x256xi32>
    %21 = arith.cmpi eq, %17, %20 : vector<1x256xi32>
    %c16_i32_5 = arith.constant 16 : i32
    %22 = vector.broadcast %c16_i32_5 : i32 to vector<1x256xi32>
    %23 = arith.cmpi slt, %1, %22 : vector<1x256xi32>
    %c240_i32 = arith.constant 240 : i32
    %24 = vector.broadcast %c240_i32 : i32 to vector<1x256xi32>
    %25 = arith.cmpi sge, %1, %24 : vector<1x256xi32>
    %c1_i32_6 = arith.constant 1 : i32
    %26 = tpu.dynamic_rotate %0 by %c1_i32_6 dim 1 : vector<8x256xf32>, i32 -> vector<8x256xf32>
    %cst = arith.constant 0xFF800000 : f32
    %27 = vector.shape_cast %19 : vector<1x256xi1> to vector<1x256xi1>
    %28 = vector.broadcast %27 : vector<1x256xi1> to vector<8x256xi1>
    %29 = vector.broadcast %cst : f32 to vector<8x256xf32>
    %30 = arith.select %28, %29, %26 : vector<8x256xi1>, vector<8x256xf32>
    %c255_i32 = arith.constant 255 : i32
    %31 = tpu.dynamic_rotate %0 by %c255_i32 dim 1 : vector<8x256xf32>, i32 -> vector<8x256xf32>
    %cst_7 = arith.constant 0xFF800000 : f32
    %32 = vector.shape_cast %21 : vector<1x256xi1> to vector<1x256xi1>
    %33 = vector.broadcast %32 : vector<1x256xi1> to vector<8x256xi1>
    %34 = vector.broadcast %cst_7 : f32 to vector<8x256xf32>
    %35 = arith.select %33, %34, %31 : vector<8x256xi1>, vector<8x256xf32>
    %36 = arith.maximumf %30, %0 : vector<8x256xf32>
    %37 = arith.maximumf %36, %35 : vector<8x256xf32>
    %c16_i32_8 = arith.constant 16 : i32
    %38 = tpu.dynamic_rotate %37 by %c16_i32_8 dim 1 : vector<8x256xf32>, i32 -> vector<8x256xf32>
    %cst_9 = arith.constant 0xFF800000 : f32
    %39 = vector.shape_cast %23 : vector<1x256xi1> to vector<1x256xi1>
    %40 = vector.broadcast %39 : vector<1x256xi1> to vector<8x256xi1>
    %41 = vector.broadcast %cst_9 : f32 to vector<8x256xf32>
    %42 = arith.select %40, %41, %38 : vector<8x256xi1>, vector<8x256xf32>
    %c240_i32_10 = arith.constant 240 : i32
    %43 = tpu.dynamic_rotate %37 by %c240_i32_10 dim 1 : vector<8x256xf32>, i32 -> vector<8x256xf32>
    %cst_11 = arith.constant 0xFF800000 : f32
    %44 = vector.shape_cast %25 : vector<1x256xi1> to vector<1x256xi1>
    %45 = vector.broadcast %44 : vector<1x256xi1> to vector<8x256xi1>
    %46 = vector.broadcast %cst_11 : f32 to vector<8x256xf32>
    %47 = arith.select %45, %46, %43 : vector<8x256xi1>, vector<8x256xf32>
    %48 = arith.maximumf %42, %37 : vector<8x256xf32>
    %49 = arith.maximumf %48, %47 : vector<8x256xf32>
    %c0_12 = arith.constant 0 : index
    %c0_13 = arith.constant 0 : index
    %50 = vector.load %arg2[%c0_12, %c0_13] : memref<16x8xf32, #tpu.memory_space<vmem>>, vector<16x8xf32>
    %c0_14 = arith.constant 0 : index
    %c0_15 = arith.constant 0 : index
    %51 = vector.load %arg3[%c0_14, %c0_15] : memref<16x1xf32, #tpu.memory_space<vmem>>, vector<16x1xf32>
    %c0_16 = arith.constant 0 : index
    %c0_17 = arith.constant 0 : index
    %52 = vector.load %arg4[%c0_16, %c0_17] : memref<256x64xf32, #tpu.memory_space<vmem>>, vector<256x64xf32>
    %cst_18 = arith.constant dense<0.000000e+00> : vector<8x64xf32>
    %53 = tpu.matmul %49, %52, %cst_18 {dimension_numbers = #tpu.dot_dimension_numbers<[1], [0], [0], [1], [0, 0, 1, 1], [], []>} : vector<8x256xf32>, vector<256x64xf32>, vector<8x64xf32> -> vector<8x64xf32>
    %cst_19 = arith.constant dense<0.000000e+00> : vector<16x64xf32>
    %54 = tpu.matmul %50, %53, %cst_19 {dimension_numbers = #tpu.dot_dimension_numbers<[1], [0], [0], [1], [0, 0, 1, 1], [], []>} : vector<16x8xf32>, vector<8x64xf32>, vector<16x64xf32> -> vector<16x64xf32>
    %55 = vector.broadcast %51 : vector<16x1xf32> to vector<16x64xf32>
    %56 = arith.addf %54, %55 : vector<16x64xf32>
    %cst_20 = arith.constant 0.000000e+00 : f32
    %57 = vector.broadcast %cst_20 : f32 to vector<16x64xf32>
    %58 = arith.maximumf %56, %57 : vector<16x64xf32>
    %c0_21 = arith.constant 0 : index
    %c0_22 = arith.constant 0 : index
    %59 = vector.load %arg5[%c0_21, %c0_22] : memref<16x64xf32, #tpu.memory_space<vmem>>, vector<16x64xf32>
    tpu.vector_store %arg5[%c0_21, %c0_22], %58 {strides = array<i32>} : memref<16x64xf32, #tpu.memory_space<vmem>>, vector<16x64xf32>,
    return
  }
  func.func @transform_0(%arg0: i32) -> (i32, i32) {
    %c0_i32 = arith.constant 0 : i32
    %c0_i32_0 = arith.constant 0 : i32
    return %arg0, %c0_i32 : i32, i32
  }
  func.func @transform_1(%arg0: i32) -> (i32, i32) {
    %c0_i32 = arith.constant 0 : i32
    %c0_i32_0 = arith.constant 0 : i32
    %c0_i32_1 = arith.constant 0 : i32
    return %c0_i32, %c0_i32_0 : i32, i32
  }
  func.func @transform_2(%arg0: i32) -> (i32, i32) {
    %c0_i32 = arith.constant 0 : i32
    %c0_i32_0 = arith.constant 0 : i32
    %c0_i32_1 = arith.constant 0 : i32
    return %c0_i32, %c0_i32_0 : i32, i32
  }
  func.func @transform_3(%arg0: i32) -> (i32, i32) {
    %c0_i32 = arith.constant 0 : i32
    %c0_i32_0 = arith.constant 0 : i32
    %c0_i32_1 = arith.constant 0 : i32
    return %c0_i32, %c0_i32_0 : i32, i32
  }
  func.func @transform_4(%arg0: i32) -> (i32, i32) {
    %c0_i32 = arith.constant 0 : i32
    %c0_i32_0 = arith.constant 0 : i32
    return %arg0, %c0_i32 : i32, i32
  }
}

</mosaic_0001>

<llo_original>
// kernel: tpu_custom_call.1
$region0: #{tpu_custom_call.1}
  #allocation0 [shape = 'u32[]', space=smem, size = 0x4, offset = 0x4, fixed_abs, tag = 'smem constant byte address 0x4 - core index']
  #allocation1 [shape = 'u32[144,128]{1,0:T(1,128)}', space=vmem, size = 0x12000, scoped, tag = 'internal scratch']
  %s0 = inlined_call_operand.vmem [shape: f32[8,256], index: 0, kind: input, shape index: {}]
  %s1 = inlined_call_operand.vmem [shape: f32[16,8], index: 1, kind: input, shape index: {}]
  %s2 = inlined_call_operand.vmem [shape: f32[16,1], index: 2, kind: input, shape index: {}]
  %s3 = inlined_call_operand.vmem [shape: f32[256,64], index: 3, kind: input, shape index: {}]
  %s4 = inlined_call_operand.hbm [shape: f32[16,64], index: 4, kind: output, shape index: {}]
  %s5 = sld [smem:[#allocation0]]
  $region26: #{tpu_custom_call.1} parent=0
    _
  %s7 = ssub.s32 1, %s5
  %s8 = scalar_select 0, %s7, %s5
  $region1: #{tpu_custom_call.1} parent=0
    #allocation2 [shape = 'u8[8192]{0}', space=vmem, size = 0x2000, scoped, tag = 'output window, operand 0, single buffered']
    #allocation3 [shape = 's32[1]{0}', space=sflag, size = 0x4, scoped, tag = 'scoped memory for tpu_custom_call.1']
    %9 = vsyncpa [#allocation3], 0
    // Predicated region
    $region2: #{tpu_custom_call.1} parent=1 // pred_check
      _
    $region3: #{tpu_custom_call.1} parent=1 // pred_check_branch
      %11 = sbr.rel (0) target = $region5
    $region4: #{tpu_custom_call.1} parent=1 // pred_region
      _
    $region5: #{tpu_custom_call.1} parent=1 // pred_fallthru
      _
    // Predicated region
    $region6: #{tpu_custom_call.1} parent=1 // pred_check
      _
    $region7: #{tpu_custom_call.1} parent=1 // pred_check_branch
      %13 = sbr.rel (0) target = $region9
    $region8: #{tpu_custom_call.1} parent=1 // pred_region
      _
    $region9: #{tpu_custom_call.1} parent=1 // pred_fallthru
      _
    // Predicated region
    $region10: #{tpu_custom_call.1} parent=1 // pred_check
      _
    $region11: #{tpu_custom_call.1} parent=1 // pred_check_branch
      %15 = sbr.rel (0) target = $region13
    $region12: #{tpu_custom_call.1} parent=1 // pred_region
      _
    $region13: #{tpu_custom_call.1} parent=1 // pred_fallthru
      _
    // Predicated region
    $region14: #{tpu_custom_call.1} parent=1 // pred_check
      _
    $region15: #{tpu_custom_call.1} parent=1 // pred_check_branch
      %17 = sbr.rel (0) target = $region17
    $region16: #{tpu_custom_call.1} parent=1 // pred_region
      _
    $region17: #{tpu_custom_call.1} parent=1 // pred_fallthru
      _
    %v18 = vld [vmem:[%s0] sm:$0xff]
    %v19 = vld [vmem:[%s0 + $0x8] sm:$0xff]
    %v20 = vlaneseq
    %v21 = vand.u32 %v20, 127
    %v22 = vadd.s32 %v21, 128
    %vm23 = vcmp.lt.s32.totalorder %v21, 0
    %v24 = vsub.s32 0, %v21
    %v25 = vsel %vm23, %v24, %v21
    %v26 = vshrl.u32 %v25, 4
    %v27 = vand.u32 %v25, 15
    %v28 = vsub.s32 0, %v27
    %v29 = vsel %vm23, %v28, %v27
    %vm30 = vcmp.lt.s32.totalorder %v22, 0
    %v31 = vsub.s32 0, %v22
    %v32 = vsel %vm30, %v31, %v22
    %v33 = vshrl.u32 %v32, 4
    %v34 = vand.u32 %v32, 15
    %v35 = vsub.s32 0, %v34
    %v36 = vsel %vm30, %v35, %v34
    %vm37 = vcmp.ne.s32.totalorder %v29, 0
    %vm38 = vcmp.ne.s32.totalorder %v36, 0
    %vm39 = vcmp.lt.s32.totalorder %v29, 0
    %vm40 = vcmp.lt.s32.totalorder %v36, 0
    %vm41 = vmand %vm39, %vm37
    %vm42 = vmand %vm40, %vm38
    %v43 = vadd.s32 %v29, 16
    %v44 = vadd.s32 %v36, 16
    %v45 = vsel %vm41, %v43, %v29
    %v46 = vsel %vm42, %v44, %v36
    %vm47 = vcmp.eq.s32.totalorder %v45, 0
    %vm48 = vcmp.eq.s32.totalorder %v46, 0
    %vm49 = vcmp.eq.s32.totalorder %v45, 15
    %vm50 = vcmp.eq.s32.totalorder %v46, 15
    %vm51 = vcmp.lt.s32.totalorder %v21, 16
    %vm52 = vcmp.lt.s32.totalorder %v22, 16
    %vm53 = vcmp.ge.s32.totalorder %v21, 240
    %vm54 = vcmp.ge.s32.totalorder %v22, 240
    %55 = vrot.lane.b32.xlu0 %v18, 1
    %v56 = vpop.permute.xlu0 %55
    %57 = vrot.lane.b32.xlu0 %v19, 1
    %v58 = vpop.permute.xlu0 %57
    %vm59 = vcmp.lt.s32.totalorder %v21, 1
    %v60 = vsel %vm59, %v56, %v58
    %v61 = vsel %vm59, %v58, %v56
    %v62 = vsel %vm47, 1, 0
    %v63 = vsel %vm48, 1, 0
    %vm64 = vcmp.eq.s32.totalorder %v62, 1
    %vm65 = vcmp.eq.s32.totalorder %v63, 1
    %v66 = vsel %vm64, -inf, %v61
    %v67 = vsel %vm65, -inf, %v60
    %68 = vrot.lane.b32.xlu0 %v18, 127
    %v69 = vpop.permute.xlu0 %68
    %70 = vrot.lane.b32.xlu0 %v19, 127
    %v71 = vpop.permute.xlu0 %70
    %vm72 = vcmp.lt.s32.totalorder %v21, 127
    %v73 = vsel %vm72, %v69, %v71
    %v74 = vsel %vm72, %v71, %v69
    %v75 = vsel %vm49, 1, 0
    %v76 = vsel %vm50, 1, 0
    %vm77 = vcmp.eq.s32.totalorder %v75, 1
    %vm78 = vcmp.eq.s32.totalorder %v76, 1
    %v79 = vsel %vm77, -inf, %v73
    %v80 = vsel %vm78, -inf, %v74
    %v81 = vmax.f32 %v66, %v18
    %v82 = vmax.f32 %v67, %v19
    %v83 = vmax.f32 %v81, %v79
    %v84 = vmax.f32 %v82, %v80
    %85 = vrot.lane.b32.xlu0 %v83, 16
    %v86 = vpop.permute.xlu0 %85
    %87 = vrot.lane.b32.xlu0 %v84, 16
    %v88 = vpop.permute.xlu0 %87
    %v89 = vsel %vm51, %v86, %v88
    %v90 = vsel %vm51, %v88, %v86
    %v91 = vsel %vm51, 1, 0
    %v92 = vsel %vm52, 1, 0
    %vm93 = vcmp.eq.s32.totalorder %v91, 1
    %vm94 = vcmp.eq.s32.totalorder %v92, 1
    %v95 = vsel %vm93, -inf, %v90
    %v96 = vsel %vm94, -inf, %v89
    %97 = vrot.lane.b32.xlu0 %v83, 112
    %v98 = vpop.permute.xlu0 %97
    %99 = vrot.lane.b32.xlu0 %v84, 112
    %v100 = vpop.permute.xlu0 %99
    %vm101 = vcmp.lt.s32.totalorder %v21, 112
    %v102 = vsel %vm101, %v98, %v100
    %v103 = vsel %vm101, %v100, %v98
    %v104 = vsel %vm53, 1, 0
    %v105 = vsel %vm54, 1, 0
    %vm106 = vcmp.eq.s32.totalorder %v104, 1
    %vm107 = vcmp.eq.s32.totalorder %v105, 1
    %v108 = vsel %vm106, -inf, %v102
    %v109 = vsel %vm107, -inf, %v103
    %v110 = vmax.f32 %v95, %v83
    %v111 = vmax.f32 %v96, %v84
    %v112 = vmax.f32 %v110, %v108
    %v113 = vmax.f32 %v111, %v109
    %v114 = vld [vmem:[%s1] sm:$0xff]
    %v115 = vld [vmem:[%s1 + $0x8] sm:$0xff]
    %v116 = vld [vmem:[%s2] sm:$0xff]
    %v117 = vld [vmem:[%s2 + $0x8] sm:$0xff]
    %v118 = vld [vmem:[%s3] sm:$0xff]
    %v119 = vld [vmem:[%s3 + $0x8] sm:$0xff]
    %v120 = vld [vmem:[%s3 + $0x10] sm:$0xff]
    %v121 = vld [vmem:[%s3 + $0x18] sm:$0xff]
    %v122 = vld [vmem:[%s3 + $0x20] sm:$0xff]
    %v123 = vld [vmem:[%s3 + $0x28] sm:$0xff]
    %v124 = vld [vmem:[%s3 + $0x30] sm:$0xff]
    %v125 = vld [vmem:[%s3 + $0x38] sm:$0xff]
    %v126 = vld [vmem:[%s3 + $0x40] sm:$0xff]
    %v127 = vld [vmem:[%s3 + $0x48] sm:$0xff]
    %v128 = vld [vmem:[%s3 + $0x50] sm:$0xff]
    %v129 = vld [vmem:[%s3 + $0x58] sm:$0xff]
    %v130 = vld [vmem:[%s3 + $0x60] sm:$0xff]
    %v131 = vld [vmem:[%s3 + $0x68] sm:$0xff]
    %v132 = vld [vmem:[%s3 + $0x70] sm:$0xff]
    %v133 = vld [vmem:[%s3 + $0x78] sm:$0xff]
    %v134 = vld [vmem:[%s3 + $0x80] sm:$0xff]
    %v135 = vld [vmem:[%s3 + $0x88] sm:$0xff]
    %v136 = vld [vmem:[%s3 + $0x90] sm:$0xff]
    %v137 = vld [vmem:[%s3 + $0x98] sm:$0xff]
    %v138 = vld [vmem:[%s3 + $0xa0] sm:$0xff]
    %v139 = vld [vmem:[%s3 + $0xa8] sm:$0xff]
    %v140 = vld [vmem:[%s3 + $0xb0] sm:$0xff]
    %v141 = vld [vmem:[%s3 + $0xb8] sm:$0xff]
    %v142 = vld [vmem:[%s3 + $0xc0] sm:$0xff]
    %v143 = vld [vmem:[%s3 + $0xc8] sm:$0xff]
    %v144 = vld [vmem:[%s3 + $0xd0] sm:$0xff]
    %v145 = vld [vmem:[%s3 + $0xd8] sm:$0xff]
    %v146 = vld [vmem:[%s3 + $0xe0] sm:$0xff]
    %v147 = vld [vmem:[%s3 + $0xe8] sm:$0xff]
    %v148 = vld [vmem:[%s3 + $0xf0] sm:$0xff]
    %v149 = vld [vmem:[%s3 + $0xf8] sm:$0xff]
    %150 = vmatprep.subr.mxu0 0.0
    %151 = vmatpush1.msra.mxu0 %v133
    %152 = vmatprep.subr.mxu0 0.0
    %153 = vmatpush1.msra.mxu0 %v132
    %154 = vmatprep.subr.mxu0 0.0
    %155 = vmatpush1.msra.mxu0 %v131
    %156 = vmatprep.subr.mxu0 0.0
    %157 = vmatpush1.msra.mxu0 %v130
    %158 = vmatprep.subr.mxu0 0.0
    %159 = vmatpush1.msra.mxu0 %v129
    %160 = vmatprep.subr.mxu0 0.0
    %161 = vmatpush1.msra.mxu0 %v128
    %162 = vmatprep.subr.mxu0 0.0
    %163 = vmatpush1.msra.mxu0 %v127
    %164 = vmatprep.subr.mxu0 0.0
    %165 = vmatpush1.msra.mxu0 %v126
    %166 = vmatprep.subr.mxu0 0.0
    %167 = vmatpush1.msra.mxu0 %v125
    %168 = vmatprep.subr.mxu0 0.0
    %169 = vmatpush1.msra.mxu0 %v124
    %170 = vmatprep.subr.mxu0 0.0
    %171 = vmatpush1.msra.mxu0 %v123
    %172 = vmatprep.subr.mxu0 0.0
    %173 = vmatpush1.msra.mxu0 %v122
    %174 = vmatprep.subr.mxu0 0.0
    %175 = vmatpush1.msra.mxu0 %v121
    %176 = vmatprep.subr.mxu0 0.0
    %177 = vmatpush1.msra.mxu0 %v120
    %178 = vmatprep.subr.mxu0 0.0
    %179 = vmatpush1.msra.mxu0 %v119
    %180 = vmatprep.subr.mxu0 0.0
    %181 = vmatpush1.msra.mxu0 %v118
    %182 = vmatprep.subr.mxu0 0.0
    %183 = vmatpush2.msra.mxu0 %v149
    %184 = vmatprep.subr.mxu0 0.0
    %185 = vmatpush2.msra.mxu0 %v148
    %186 = vmatprep.subr.mxu0 0.0
    %187 = vmatpush2.msra.mxu0 %v147
    %188 = vmatprep.subr.mxu0 0.0
    %189 = vmatpush2.msra.mxu0 %v146
    %190 = vmatprep.subr.mxu0 0.0
    %191 = vmatpush2.msra.mxu0 %v145
    %192 = vmatprep.subr.mxu0 0.0
    %193 = vmatpush2.msra.mxu0 %v144
    %194 = vmatprep.subr.mxu0 0.0
    %195 = vmatpush2.msra.mxu0 %v143
    %196 = vmatprep.subr.mxu0 0.0
    %197 = vmatpush2.msra.mxu0 %v142
    %198 = vmatprep.subr.mxu0 0.0
    %199 = vmatpush2.msra.mxu0 %v141
    %200 = vmatprep.subr.mxu0 0.0
    %201 = vmatpush2.msra.mxu0 %v140
    %202 = vmatprep.subr.mxu0 0.0
    %203 = vmatpush2.msra.mxu0 %v139
    %204 = vmatprep.subr.mxu0 0.0
    %205 = vmatpush2.msra.mxu0 %v138
    %206 = vmatprep.subr.mxu0 0.0
    %207 = vmatpush2.msra.mxu0 %v137
    %208 = vmatprep.subr.mxu0 0.0
    %209 = vmatpush2.msra.mxu0 %v136
    %210 = vmatprep.subr.mxu0 0.0
    %211 = vmatpush2.msra.mxu0 %v135
    %212 = vmatprep.subr.mxu0 0.0
    %213 = vmatpush2.msra.mxu0 %v134
    %214 = vmatprep.mubr.f32.mxu0 %v113
    %215 = vmatmul.mubr.f32.gmra.mxu0 %v112
    %v216 = vpop.f32.mrf.mxu0
    %v217 = vadd.f32 0.0, %v216
    %v218 = vpop.f32.mrf.mxu0
    %219 = vdwg.mxu0
    %221 = vset.pattern.permute.xlu0 0
    %222 = vperm.xlu0 %221, %v116
    %v223 = vpop.permute.xlu0 %222
    %226 = vset.pattern.permute.xlu0 0
    %227 = vperm.xlu0 %226, %v117
    %v228 = vpop.permute.xlu0 %227
    %vm230 = vcmask 64512
    %v232 = vsel %vm230, %v114, 0
    %v235 = vsel %vm230, %v115, 0
    %237 = vmatprep.subr.mxu0 0.0
    %238 = vmatpush1.msra.mxu0 0.0
    %239 = vmatprep.subr.mxu0 0.0
    %240 = vmatpush1.msra.mxu0 0.0
    %241 = vmatprep.subr.mxu0 0.0
    %242 = vmatpush1.msra.mxu0 0.0
    %243 = vmatprep.subr.mxu0 0.0
    %244 = vmatpush1.msra.mxu0 0.0
    %245 = vmatprep.subr.mxu0 0.0
    %246 = vmatpush1.msra.mxu0 0.0
    %247 = vmatprep.subr.mxu0 0.0
    %248 = vmatpush1.msra.mxu0 0.0
    %249 = vmatprep.subr.mxu0 0.0
    %250 = vmatpush1.msra.mxu0 0.0
    %251 = vmatprep.subr.mxu0 0.0
    %252 = vmatpush1.msra.mxu0 0.0
    %253 = vmatprep.subr.mxu0 0.0
    %254 = vmatpush1.msra.mxu0 0.0
    %255 = vmatprep.subr.mxu0 0.0
    %256 = vmatpush1.msra.mxu0 0.0
    %257 = vmatprep.subr.mxu0 0.0
    %258 = vmatpush1.msra.mxu0 0.0
    %259 = vmatprep.subr.mxu0 0.0
    %260 = vmatpush1.msra.mxu0 0.0
    %261 = vmatprep.subr.mxu0 0.0
    %262 = vmatpush1.msra.mxu0 0.0
    %263 = vmatprep.subr.mxu0 0.0
    %264 = vmatpush1.msra.mxu0 0.0
    %265 = vmatprep.subr.mxu0 0.0
    %266 = vmatpush1.msra.mxu0 0.0
    %267 = vmatprep.subr.mxu0 0.0
    %268 = vmatpush1.msra.mxu0 %v217
    %269 = vmatprep.subr.mxu0 0.0
    %270 = vmatpush2.msra.mxu0 0.0
    %271 = vmatprep.subr.mxu0 0.0
    %272 = vmatpush2.msra.mxu0 0.0
    %273 = vmatprep.subr.mxu0 0.0
    %274 = vmatpush2.msra.mxu0 0.0
    %275 = vmatprep.subr.mxu0 0.0
    %276 = vmatpush2.msra.mxu0 0.0
    %277 = vmatprep.subr.mxu0 0.0
    %278 = vmatpush2.msra.mxu0 0.0
    %279 = vmatprep.subr.mxu0 0.0
    %280 = vmatpush2.msra.mxu0 0.0
    %281 = vmatprep.subr.mxu0 0.0
    %282 = vmatpush2.msra.mxu0 0.0
    %283 = vmatprep.subr.mxu0 0.0
    %284 = vmatpush2.msra.mxu0 0.0
    %285 = vmatprep.subr.mxu0 0.0
    %286 = vmatpush2.msra.mxu0 0.0
    %287 = vmatprep.subr.mxu0 0.0
    %288 = vmatpush2.msra.mxu0 0.0
    %289 = vmatprep.subr.mxu0 0.0
    %290 = vmatpush2.msra.mxu0 0.0
    %291 = vmatprep.subr.mxu0 0.0
    %292 = vmatpush2.msra.mxu0 0.0
    %293 = vmatprep.subr.mxu0 0.0
    %294 = vmatpush2.msra.mxu0 0.0
    %295 = vmatprep.subr.mxu0 0.0
    %296 = vmatpush2.msra.mxu0 0.0
    %297 = vmatprep.subr.mxu0 0.0
    %298 = vmatpush2.msra.mxu0 0.0
    %299 = vmatprep.subr.mxu0 0.0
    %300 = vmatpush2.msra.mxu0 0.0
    %301 = vmatprep.mubr.f32.mxu0 0.0
    %302 = vmatmul.mubr.f32.gmra.mxu0 %v232
    %v303 = vpop.f32.mrf.mxu0
    %v304 = vadd.f32 %v223, %v303
    %v305 = vpop.f32.mrf.mxu0
    %306 = vmatprep.mubr.f32.mxu0 0.0
    %307 = vmatmul.mubr.f32.gmra.mxu0 %v235
    %v308 = vpop.f32.mrf.mxu0
    %v309 = vadd.f32 %v228, %v308
    %v310 = vpop.f32.mrf.mxu0
    %311 = vdwg.mxu0
    %v312 = vmax.f32 %v304, 0.0
    %v313 = vmax.f32 %v309, 0.0
    %vm314 = vcmask 523264
    %315 = vst.msk [vmem:[#allocation2] sm:$0xff] %vm314, %v312
    %316 = vst.msk [vmem:[#allocation2 + $0x8] sm:$0xff] %vm314, %v313
    // Predicated region
    $region18: #{tpu_custom_call.1} parent=1 // pred_check
      _
    $region19: #{tpu_custom_call.1} parent=1 // pred_check_branch
      %318 = sbr.rel (0) target = $region21
    $region20: #{tpu_custom_call.1} parent=1 // pred_region
      %s320 = ssub.s32 256, 256
      %321 = vsyncadd [#allocation3], %s320
      %s322 = sshll.u32 [#allocation2], 4
      %s323 = int_to_ptr.vmem [resolvable:$true] %s322
      %328 = dma.vmem_to_hbm [thread:$0]  %s323, 256, %s4, [#allocation3], 128, 128, 8
    $region21: #{tpu_custom_call.1} parent=1 // pred_fallthru
      _
    // Predicated region
    $region22: #{tpu_custom_call.1} parent=1 // pred_check
      _
    $region23: #{tpu_custom_call.1} parent=1 // pred_check_branch
      %330 = sbr.rel (0) target = $region25
    $region24: #{tpu_custom_call.1} parent=1 // pred_region
      %331 = dma.done [#allocation3], 256
    $region25: #{tpu_custom_call.1} parent=1 // pred_fallthru
      _
    %332 = vsyncpa [#allocation3], 1

</llo_original>
